<compile_context>
chip_gen: v7x
topology: tpu7x:2x2x1
jax: 0.10.0
libtpu: 0.0.40
codegen_flags: <defaults>
</compile_context>

<pallas_src>
import jax
import jax.numpy as jnp
from jax.experimental import pallas as pl
from jax.experimental.pallas import tpu as pltpu


IN_FEATURES = 28 * 28
HIDDEN = 128
OUT_FEATURES = 10

_VMEM_LIMIT_BYTES = 32 * 1024 * 1024   # explicit scoped-VMEM limit for all calls


def _clip_block_budget_bytes():
    # 4 MiB blocks on chips with >=128 MiB VMEM (v5e/v6e); 2 MiB on v7x (64 MiB/TC).
    try:
        info = pltpu.get_tpu_info()
        cap = getattr(info, "vmem_capacity_bytes", 64 << 20)
    except Exception:
        cap = 64 << 20
    return (4 << 20) if cap >= (128 << 20) else (2 << 20)


_CLIP_BLOCK_BUDGET = _clip_block_budget_bytes()


# ---------------------------------------------------------------------------
# Fused model kernel: x -> Linear -> ReLU -> (gated clamp) -> Linear -> ReLU -> Neg
# ---------------------------------------------------------------------------
def _fused_model_kernel(limits_ref, node_ref, x_ref, w0_ref, b0_ref, w1_ref, o_ref):
    # limits_ref : SMEM f32[2]  -> [min_val, max_val] (traced, no recompiles)
    # node_ref   : SMEM i32[1]  -> hidden-node index; -1 means "clamp all nodes"
    h = jnp.dot(x_ref[...], w0_ref[...], preferred_element_type=jnp.float32)
    h = h + b0_ref[...].astype(jnp.float32)
    h = jnp.maximum(h, 0.0)

    lo = limits_ref[0].astype(h.dtype)
    hi = limits_ref[1].astype(h.dtype)
    node = node_ref[0]
    clamped = jnp.clip(h, lo, hi)
    col = jax.lax.broadcasted_iota(jnp.int32, h.shape, 1)
    gate = jnp.logical_or(node < 0, col == node)
    h = jnp.where(gate, clamped, h)

    y = jnp.dot(h.astype(w1_ref.dtype), w1_ref[...],
                preferred_element_type=jnp.float32)
    y = jnp.maximum(y, 0.0)
    o_ref[...] = (-y).astype(o_ref.dtype)


def _choose_batch_tile(B):
    """Batch tile: multiple of 8 (or full B), capped at 1024 rows, and chosen
    so that B > 256 always yields >= 2 grid steps (v7x 2-TC sharding)."""
    if B <= 256:
        return B                                   # full-dim exception
    half = -(-(-(-B // 2)) // 8) * 8               # round_up(ceil(B/2), 8)
    return min(1024, max(256, half))


@jax.jit
def _model_forward(x, w0, b0, w1, limits, node_idx):
    B, K = x.shape
    H = w0.shape[1]
    O = w1.shape[1]
    TB = _choose_batch_tile(B)
    grid = (pl.cdiv(B, TB),)                        # ragged tail handled by Pallas
    return pl.pallas_call(
        _fused_model_kernel,
        out_shape=jax.ShapeDtypeStruct((B, O), jnp.float32),
        grid=grid,
        in_specs=[
            pl.BlockSpec(memory_space=pltpu.MemorySpace.SMEM),   # limits
            pl.BlockSpec(memory_space=pltpu.MemorySpace.SMEM),   # node_idx
            # TODO(synk): on v7x, add pipeline_mode=pl.Buffered(3) here if a
            # profile shows exposed DMA on the x tile (shared HBM between TCs).
            pl.BlockSpec((TB, K), lambda i: (i, 0)),             # x tile (streamed)
            pl.BlockSpec((K, H), lambda i: (0, 0)),              # W0 (resident)
            pl.BlockSpec((1, H), lambda i: (0, 0)),              # b0 (resident)
            pl.BlockSpec((H, O), lambda i: (0, 0)),              # W1 (resident)
        ],
        out_specs=pl.BlockSpec((TB, O), lambda i: (i, 0)),
        compiler_params=pltpu.CompilerParams(
            dimension_semantics=("parallel",),
            vmem_limit_bytes=_VMEM_LIMIT_BYTES),
    )(limits, node_idx, x, w0, b0, w1)


# ---------------------------------------------------------------------------
# Standalone PerturbationLayer kernel: ONE gated streaming clip on a 2-D view.
#   meta = [node_idx (-1 => all), inner] ; channel c owns columns
#   [c*inner, (c+1)*inner) of the flattened (B, -1) view.
# ---------------------------------------------------------------------------
def _gated_clip_kernel(limits_ref, meta_ref, x_ref, o_ref):
    x = x_ref[...]
    lo = limits_ref[0].astype(x.dtype)      # compute stays in x.dtype
    hi = limits_ref[1].astype(x.dtype)
    node = meta_ref[0]
    inner = meta_ref[1]

    clamped = jnp.clip(x, lo, hi)
    tn = x.shape[-1]
    col = pl.program_id(1) * tn + jax.lax.broadcasted_iota(jnp.int32, x.shape, 1)
    lo_col = node * inner
    gate = jnp.logical_or(
        node < 0, jnp.logical_and(col >= lo_col, col < lo_col + inner))
    o_ref[...] = jnp.where(gate, clamped, x)


def _choose_clip_tiles(rows, cols, itemsize, budget):
    # ~budget bytes per block: (in + out) x double-buffering stays well inside
    # the explicit 32 MiB scoped-VMEM limit on every generation.
    if cols * 8 * itemsize <= budget:
        tn = cols                                              # full width
    else:
        tn = max(128, (budget // (8 * itemsize)) // 128 * 128)
    max_tm = max(8, budget // (tn * itemsize))
    tm = rows if rows <= max_tm else max(8, (max_tm // 8) * 8)
    return tm, tn


@jax.jit
def _gated_clip_pallas_2d(x2, limits, meta):
    rows, cols = x2.shape
    tm, tn = _choose_clip_tiles(rows, cols, x2.dtype.itemsize, _CLIP_BLOCK_BUDGET)
    grid = (pl.cdiv(rows, tm), pl.cdiv(cols, tn))              # no dropped tails
    return pl.pallas_call(
        _gated_clip_kernel,
        out_shape=jax.ShapeDtypeStruct((rows, cols), x2.dtype),
        grid=grid,
        in_specs=[
            pl.BlockSpec(memory_space=pltpu.MemorySpace.SMEM),   # limits
            pl.BlockSpec(memory_space=pltpu.MemorySpace.SMEM),   # [node, inner]
            pl.BlockSpec((tm, tn), lambda i, j: (i, j)),
        ],
        out_specs=pl.BlockSpec((tm, tn), lambda i, j: (i, j)),
        compiler_params=pltpu.CompilerParams(
            dimension_semantics=("parallel", "parallel"),        # 2-TC on v7x
            vmem_limit_bytes=_VMEM_LIMIT_BYTES),
    )(limits, meta, x2)


# ---------------------------------------------------------------------------
# Module-level classes mirroring the PyTorch spec.
# ---------------------------------------------------------------------------
class PerturbationLayer:
    """JAX/Pallas port of the PyTorch PerturbationLayer (no learnable params)."""

    def __init__(self):
        self.reset_perturbation()

    def forward(self, x):
        if self.min_val == float('-inf') and self.max_val == float('inf'):
            return x                                            # identity fast-path
        limits = jnp.array([self.min_val, self.max_val], dtype=jnp.float32)
        if self.node_idx is None:
            node, inner = -1, 1
        else:
            if not (0 <= int(self.node_idx) < x.shape[1]):
                raise IndexError(
                    f"node_idx {self.node_idx} out of range for dim 1 of size {x.shape[1]}")
            node = int(self.node_idx)
            inner = 1
            for d in x.shape[2:]:
                inner *= int(d)
        meta = jnp.array([node, inner], dtype=jnp.int32)
        # Single gated pass: one HBM read + one write of x (no .at[].set copy).
        x2 = x.reshape(x.shape[0], -1)
        return _gated_clip_pallas_2d(x2, limits, meta).reshape(x.shape)

    __call__ = forward

    def set_perturbation(self, min_val=float('-inf'), max_val=float('inf'),
                         node_idx=None):
        self.min_val = min_val
        self.max_val = max_val
        self.node_idx = node_idx

    def reset_perturbation(self):
        self.min_val = float('-inf')
        self.max_val = float('inf')
        self.node_idx = None

    def get_perturbation(self):
        return {'min_val': self.min_val, 'max_val': self.max_val,
                'node_idx': self.node_idx}


class Neg:
    def __call__(self, x):
        return -x


class Model_ReLU2_Neg:
    """x -> Linear(784,128) -> ReLU -> Perturbation -> Linear(128,10) -> ReLU -> Neg.

    compute_dtype=jnp.bfloat16 halves the dominant x/W HBM traffic (the kernel
    is memory-bound on the x-tile read); accumulation/bias/clamp stay f32.
    Default f32 preserves the PyTorch module's numerics exactly.
    """

    def __init__(self, key, compute_dtype=jnp.float32):
        k0, k1, k2 = jax.random.split(key, 3)
        lim0 = 1.0 / (IN_FEATURES ** 0.5)
        lim1 = 1.0 / (HIDDEN ** 0.5)
        self.compute_dtype = compute_dtype
        # Weights stored pre-transposed for the kernel ((in, out) layout).
        self.w0 = jax.random.uniform(
            k0, (IN_FEATURES, HIDDEN), jnp.float32, -lim0, lim0).astype(compute_dtype)
        self.b0 = jax.random.uniform(k1, (1, HIDDEN), jnp.float32, -lim0, lim0)
        self.w1 = jax.random.uniform(
            k2, (HIDDEN, OUT_FEATURES), jnp.float32, -lim1, lim1).astype(compute_dtype)
        self.perturbation = PerturbationLayer()

    def forward(self, x):
        p = self.perturbation
        if p.node_idx is not None and not (0 <= int(p.node_idx) < HIDDEN):
            raise IndexError(
                f"node_idx {p.node_idx} out of range for hidden size {HIDDEN}")
        limits = jnp.array([p.min_val, p.max_val], dtype=jnp.float32)
        node = jnp.array([-1 if p.node_idx is None else int(p.node_idx)], jnp.int32)
        return _model_forward(x.astype(self.compute_dtype),
                              self.w0, self.b0, self.w1, limits, node)

    __call__ = forward

    def name(self):
        return 'ReLU2-Neg'

    def description(self):
        return 'x -> Linear -> ReLU -> Linear -> ReLU -> Neg -> y'


# ---------------------------------------------------------------------------
if __name__ == "__main__":
    key = jax.random.PRNGKey(0)
    k_model, k_x, k_x4d, k_xl, k_x2d = jax.random.split(key, 5)

    model = Model_ReLU2_Neg(k_model)                         # f32 reference model
    x = jax.random.normal(k_x, (2, IN_FEATURES), dtype=jnp.float32)

    def ref_forward(xx, min_val, max_val, node_idx):
        h = jnp.maximum(
            jnp.dot(xx, model.w0, precision=jax.lax.Precision.HIGHEST) + model.b0, 0.0)
        if not (min_val == float('-inf') and max_val == float('inf')):
            if node_idx is None:
                h = jnp.clip(h, min_val, max_val)
            else:
                h = h.at[:, node_idx].set(jnp.clip(h[:, node_idx], min_val, max_val))
        return -jnp.maximum(
            jnp.dot(h, model.w1, precision=jax.lax.Precision.HIGHEST), 0.0)

    # Case 1: identity perturbation (default state).
    y32 = model(x)
    jax.block_until_ready(y32)
    assert jnp.allclose(y32, ref_forward(x, float('-inf'), float('inf'), None),
                        atol=1e-3, rtol=1e-3)

    # Case 2: clamp the whole hidden layer (no recompile — traced scalars).
    model.perturbation.set_perturbation(min_val=0.0, max_val=0.05, node_idx=None)
    y = model(x)
    jax.block_until_ready(y)
    assert jnp.allclose(y, ref_forward(x, 0.0, 0.05, None), atol=1e-3, rtol=1e-3)

    # Case 3: clamp a single hidden node.
    model.perturbation.set_perturbation(min_val=-0.02, max_val=0.03, node_idx=5)
    y = model(x)
    jax.block_until_ready(y)
    assert jnp.allclose(y, ref_forward(x, -0.02, 0.03, 5), atol=1e-3, rtol=1e-3)

    # Case 4: batch > 256 -> >=2 grid steps (ragged tail block exercised).
    model.perturbation.reset_perturbation()
    xl = jax.random.normal(k_xl, (300, IN_FEATURES), dtype=jnp.float32)
    yl = model(xl)
    jax.block_until_ready(yl)
    assert jnp.allclose(yl, ref_forward(xl, float('-inf'), float('inf'), None),
                        atol=1e-3, rtol=1e-3)

    # Case 5: bf16 compute path (same underlying weights, looser tolerance).
    model_bf16 = Model_ReLU2_Neg(k_model, compute_dtype=jnp.bfloat16)
    y_bf = model_bf16(x)
    jax.block_until_ready(y_bf)
    assert jnp.allclose(y_bf.astype(jnp.float32), y32, atol=3e-2, rtol=3e-2)

    # Standalone PerturbationLayer on a 4-D NCHW activation.
    x4 = jax.random.normal(k_x4d, (2, 4, 16, 16), dtype=jnp.float32)
    layer = PerturbationLayer()

    layer.set_perturbation(min_val=-0.25, max_val=0.5, node_idx=None)
    y4 = layer(x4)
    jax.block_until_ready(y4)
    assert jnp.allclose(y4, jnp.clip(x4, -0.25, 0.5), atol=1e-6)

    layer.set_perturbation(min_val=-0.1, max_val=0.2, node_idx=2)
    y4n = layer(x4)
    jax.block_until_ready(y4n)
    ref4n = x4.at[:, 2].set(jnp.clip(x4[:, 2], -0.1, 0.2))
    assert jnp.allclose(y4n, ref4n, atol=1e-6)

    # Standalone PerturbationLayer on a 2-D input, single column (inner=1 gate).
    x2d = jax.random.normal(k_x2d, (4, 16), dtype=jnp.float32)
    layer.set_perturbation(min_val=-0.05, max_val=0.1, node_idx=3)
    y2d = layer(x2d)
    jax.block_until_ready(y2d)
    ref2d = x2d.at[:, 3].set(jnp.clip(x2d[:, 3], -0.05, 0.1))
    assert jnp.allclose(y2d, ref2d, atol=1e-6)

    print("KERNEL_OK")
</pallas_src>

<mosaic_0001>
module attributes {stable_mosaic.version = 11 : i64} {
  func.func @_fused_model_kernel(%arg0: i32, %arg1: memref<2xf32, #tpu.memory_space<smem>>, %arg2: memref<1xi32, #tpu.memory_space<smem>>, %arg3: memref<2x784xf32, #tpu.memory_space<vmem>>, %arg4: memref<784x128xf32, #tpu.memory_space<vmem>>, %arg5: memref<1x128xf32, #tpu.memory_space<vmem>>, %arg6: memref<128x10xf32, #tpu.memory_space<vmem>>, %arg7: memref<2x10xf32, #tpu.memory_space<vmem>>) attributes {dimension_semantics = [#tpu.dimension_semantics<parallel>], iteration_bounds = array<i64: 1>, scalar_prefetch = 0 : i64, scratch_operands = 0 : i64, tpu.core_type = #tpu.core_type<tc>, window_params = [{transform_indices = @transform_0, window_bounds = array<i64: 2>}, {transform_indices = @transform_1, window_bounds = array<i64: 1>}, {transform_indices = @transform_2, window_bounds = array<i64: 2, 784>}, {pipeline_mode = #tpu.pipeline_mode<synchronous>, transform_indices = @transform_3, window_bounds = array<i64: 784, 128>}, {pipeline_mode = #tpu.pipeline_mode<synchronous>, transform_indices = @transform_4, window_bounds = array<i64: 1, 128>}, {pipeline_mode = #tpu.pipeline_mode<synchronous>, transform_indices = @transform_5, window_bounds = array<i64: 128, 10>}, {transform_indices = @transform_6, window_bounds = array<i64: 2, 10>}]} {
    %c0 = arith.constant 0 : index
    %c0_0 = arith.constant 0 : index
    %0 = vector.load %arg3[%c0, %c0_0] : memref<2x784xf32, #tpu.memory_space<vmem>>, vector<2x784xf32>
    %c0_1 = arith.constant 0 : index
    %c0_2 = arith.constant 0 : index
    %1 = vector.load %arg4[%c0_1, %c0_2] : memref<784x128xf32, #tpu.memory_space<vmem>>, vector<784x128xf32>
    %cst = arith.constant dense<0.000000e+00> : vector<2x128xf32>
    %2 = tpu.matmul %0, %1, %cst {dimension_numbers = #tpu.dot_dimension_numbers<[1], [0], [0], [1], [0, 0, 1, 1], [], []>} : vector<2x784xf32>, vector<784x128xf32>, vector<2x128xf32> -> vector<2x128xf32>
    %c0_3 = arith.constant 0 : index
    %c0_4 = arith.constant 0 : index
    %3 = vector.load %arg5[%c0_3, %c0_4] : memref<1x128xf32, #tpu.memory_space<vmem>>, vector<1x128xf32>
    %4 = vector.broadcast %3 : vector<1x128xf32> to vector<2x128xf32>
    %5 = arith.addf %2, %4 : vector<2x128xf32>
    %cst_5 = arith.constant 0.000000e+00 : f32
    %6 = vector.broadcast %cst_5 : f32 to vector<2x128xf32>
    %7 = arith.maximumf %5, %6 : vector<2x128xf32>
    %c0_6 = arith.constant 0 : index
    %8 = memref.load %arg1[%c0_6] : memref<2xf32, #tpu.memory_space<smem>>
    %c1 = arith.constant 1 : index
    %9 = memref.load %arg1[%c1] : memref<2xf32, #tpu.memory_space<smem>>
    %c0_7 = arith.constant 0 : index
    %10 = memref.load %arg2[%c0_7] : memref<1xi32, #tpu.memory_space<smem>>
    %11 = vector.broadcast %8 : f32 to vector<2x128xf32>
    %12 = arith.maximumf %11, %7 : vector<2x128xf32>
    %13 = vector.broadcast %9 : f32 to vector<2x128xf32>
    %14 = arith.minimumf %13, %12 : vector<2x128xf32>
    %15 = tpu.iota {dimensions = array<i32: 1>} : vector<2x128xi32>
    %c0_i32 = arith.constant 0 : i32
    %16 = arith.cmpi slt, %10, %c0_i32 : i32
    %17 = vector.broadcast %10 : i32 to vector<2x128xi32>
    %18 = arith.cmpi eq, %15, %17 : vector<2x128xi32>
    %19 = vector.broadcast %16 : i1 to vector<2x128xi1>
    %20 = arith.ori %19, %18 : vector<2x128xi1>
    %21 = arith.select %20, %14, %7 : vector<2x128xi1>, vector<2x128xf32>
    %c0_8 = arith.constant 0 : index
    %c0_9 = arith.constant 0 : index
    %22 = vector.load %arg6[%c0_8, %c0_9] : memref<128x10xf32, #tpu.memory_space<vmem>>, vector<128x10xf32>
    %cst_10 = arith.constant dense<0.000000e+00> : vector<2x10xf32>
    %23 = tpu.matmul %21, %22, %cst_10 {dimension_numbers = #tpu.dot_dimension_numbers<[1], [0], [0], [1], [0, 0, 1, 1], [], []>} : vector<2x128xf32>, vector<128x10xf32>, vector<2x10xf32> -> vector<2x10xf32>
    %cst_11 = arith.constant 0.000000e+00 : f32
    %24 = vector.broadcast %cst_11 : f32 to vector<2x10xf32>
    %25 = arith.maximumf %23, %24 : vector<2x10xf32>
    %cst_12 = arith.constant 0.000000e+00 : f32
    %26 = vector.broadcast %cst_12 : f32 to vector<2x10xf32>
    %27 = arith.subf %26, %25 : vector<2x10xf32>
    %c0_13 = arith.constant 0 : index
    %c0_14 = arith.constant 0 : index
    %28 = vector.load %arg7[%c0_13, %c0_14] : memref<2x10xf32, #tpu.memory_space<vmem>>, vector<2x10xf32>
    tpu.vector_store %arg7[%c0_13, %c0_14], %27 {strides = array<i32>} : memref<2x10xf32, #tpu.memory_space<vmem>>, vector<2x10xf32>,
    return
  }
  func.func @transform_0(%arg0: i32) -> i32 {
    %c0_i32 = arith.constant 0 : i32
    %c0_i32_0 = arith.constant 0 : i32
    return %c0_i32 : i32
  }
  func.func @transform_1(%arg0: i32) -> i32 {
    %c0_i32 = arith.constant 0 : i32
    %c0_i32_0 = arith.constant 0 : i32
    return %c0_i32 : i32
  }
  func.func @transform_2(%arg0: i32) -> (i32, i32) {
    %c0_i32 = arith.constant 0 : i32
    %c0_i32_0 = arith.constant 0 : i32
    return %arg0, %c0_i32 : i32, i32
  }
  func.func @transform_3(%arg0: i32) -> (i32, i32) {
    %c0_i32 = arith.constant 0 : i32
    %c0_i32_0 = arith.constant 0 : i32
    %c0_i32_1 = arith.constant 0 : i32
    return %c0_i32, %c0_i32_0 : i32, i32
  }
  func.func @transform_4(%arg0: i32) -> (i32, i32) {
    %c0_i32 = arith.constant 0 : i32
    %c0_i32_0 = arith.constant 0 : i32
    %c0_i32_1 = arith.constant 0 : i32
    return %c0_i32, %c0_i32_0 : i32, i32
  }
  func.func @transform_5(%arg0: i32) -> (i32, i32) {
    %c0_i32 = arith.constant 0 : i32
    %c0_i32_0 = arith.constant 0 : i32
    %c0_i32_1 = arith.constant 0 : i32
    return %c0_i32, %c0_i32_0 : i32, i32
  }
  func.func @transform_6(%arg0: i32) -> (i32, i32) {
    %c0_i32 = arith.constant 0 : i32
    %c0_i32_0 = arith.constant 0 : i32
    return %arg0, %c0_i32 : i32, i32
  }
}

</mosaic_0001>

<llo_original>
// kernel: _model_forward.1
$region0: #{_model_forward.1}
  #allocation0 [shape = 'u32[]', space=smem, size = 0x4, offset = 0x4, fixed_abs, tag = 'smem constant byte address 0x4 - core index']
  #allocation1 [shape = 'u32[144,128]{1,0:T(1,128)}', space=vmem, size = 0x12000, scoped, tag = 'internal scratch']
  #allocation2 [shape = 's32[1]{0:T(128)S(6)}', space=smem, size = 0x200, scoped, tag = 'scoped memory for _model_forward.1']
  %s0 = inlined_call_operand.vmem [shape: f32[2], index: 0, kind: input, shape index: {}]
  %s1 = inlined_call_operand.<no memory space> [shape: s32[1], index: 1, kind: input, shape index: {}]
  %s2 = inlined_call_operand.vmem [shape: f32[2,784], index: 2, kind: input, shape index: {}]
  %s3 = inlined_call_operand.hbm [shape: f32[784,128], index: 3, kind: input, shape index: {}]
  %s4 = inlined_call_operand.vmem [shape: f32[1,128], index: 4, kind: input, shape index: {}]
  %s5 = inlined_call_operand.vmem [shape: f32[128,10], index: 5, kind: input, shape index: {}]
  %s6 = inlined_call_operand.hbm [shape: f32[2,10], index: 6, kind: output, shape index: {}]
  %s7 = sld [smem:[#allocation0]]
  $region42: #{_model_forward.1} parent=0
    _
  %s9 = ssub.s32 1, %s7
  %s10 = scalar_select 0, %s9, %s7
  %11 = sst [smem:[#allocation2]] %s1
  $region1: #{_model_forward.1} parent=0
    #allocation3 [shape = 'u8[512]{0}', space=smem, size = 0x200, scoped, tag = 'input window, operand 0, single buffered']
    #allocation4 [shape = 's32[1]{0}', space=sflag, size = 0x4, scoped, tag = 'scoped memory for _model_forward.1']
    #allocation5 [shape = 's32[1]{0}', space=sflag, size = 0x4, scoped, tag = 'scoped memory for _model_forward.1']
    #allocation6 [shape = 's32[1]{0}', space=sflag, size = 0x4, scoped, tag = 'scoped memory for _model_forward.1']
    #allocation7 [shape = 'u8[401408]{0}', space=vmem, size = 0x62000, scoped, tag = 'input window, operand 3, single buffered']
    #allocation8 [shape = 'u8[1024]{0}', space=vmem, size = 0x400, scoped, tag = 'output window, operand 0, single buffered']
    %12 = vsyncpa [#allocation6], 0
    %13 = vsyncpa [#allocation4], 0
    %14 = vsyncpa [#allocation5], 0
    // Predicated region
    $region2: #{_model_forward.1} parent=1 // pred_check
      _
    $region3: #{_model_forward.1} parent=1 // pred_check_branch
      %16 = sbr.rel (0) target = $region5
    $region4: #{_model_forward.1} parent=1 // pred_region
      %s18 = ssub.s32 16, 16
      %19 = vsyncadd [#allocation6], %s18
      %s21 = sshll.u32 %s0, 4
      %s22 = int_to_ptr.vmem [resolvable:$true] %s21
      %24 = dma.vmem_to_smem %s22, 16, [#allocation3], [#allocation6]
    $region5: #{_model_forward.1} parent=1 // pred_fallthru
      _
    // Predicated region
    $region6: #{_model_forward.1} parent=1 // pred_check
      _
    $region7: #{_model_forward.1} parent=1 // pred_check_branch
      %26 = sbr.rel (0) target = $region9
    $region8: #{_model_forward.1} parent=1 // pred_region
      _
    $region9: #{_model_forward.1} parent=1 // pred_fallthru
      _
    // Predicated region
    $region10: #{_model_forward.1} parent=1 // pred_check
      _
    $region11: #{_model_forward.1} parent=1 // pred_check_branch
      %28 = sbr.rel (0) target = $region13
    $region12: #{_model_forward.1} parent=1 // pred_region
      _
    $region13: #{_model_forward.1} parent=1 // pred_fallthru
      _
    // Predicated region
    $region14: #{_model_forward.1} parent=1 // pred_check
      _
    $region15: #{_model_forward.1} parent=1 // pred_check_branch
      %30 = sbr.rel (0) target = $region17
    $region16: #{_model_forward.1} parent=1 // pred_region
      %s32 = ssub.s32 12544, 12544
      %33 = vsyncadd [#allocation4], %s32
      %s34 = sshll.u32 [#allocation7], 4
      %s35 = int_to_ptr.vmem [resolvable:$true] %s34
      %40 = dma.hbm_to_vmem [thread:$0]  %s3, 12544, %s35, [#allocation4], 128, 128, 8
    $region17: #{_model_forward.1} parent=1 // pred_fallthru
      _
    // Predicated region
    $region18: #{_model_forward.1} parent=1 // pred_check
      _
    $region19: #{_model_forward.1} parent=1 // pred_check_branch
      %42 = sbr.rel (0) target = $region21
    $region20: #{_model_forward.1} parent=1 // pred_region
      _
    $region21: #{_model_forward.1} parent=1 // pred_fallthru
      _
    // Predicated region
    $region22: #{_model_forward.1} parent=1 // pred_check
      _
    $region23: #{_model_forward.1} parent=1 // pred_check_branch
      %44 = sbr.rel (0) target = $region25
    $region24: #{_model_forward.1} parent=1 // pred_region
      _
    $region25: #{_model_forward.1} parent=1 // pred_fallthru
      _
    // Predicated region
    $region26: #{_model_forward.1} parent=1 // pred_check
      _
    $region27: #{_model_forward.1} parent=1 // pred_check_branch
      %46 = sbr.rel (0) target = $region29
    $region28: #{_model_forward.1} parent=1 // pred_region
      %47 = dma.done [#allocation6], 16
    $region29: #{_model_forward.1} parent=1 // pred_fallthru
      _
    // Predicated region
    $region30: #{_model_forward.1} parent=1 // pred_check
      _
    $region31: #{_model_forward.1} parent=1 // pred_check_branch
      %49 = sbr.rel (0) target = $region33
    $region32: #{_model_forward.1} parent=1 // pred_region
      %50 = dma.done [#allocation4], 12544
    $region33: #{_model_forward.1} parent=1 // pred_fallthru
      _
    %51 = sfence
    %v52 = vld [vmem:[%s2] sm:$0xff]
    %v53 = vld [vmem:[%s2 + $0x8] sm:$0x3f]
    %v54 = vld [vmem:[#allocation7] sm:$0xff]
    %v55 = vld [vmem:[#allocation7 + $0x8] sm:$0xff]
    %v56 = vld [vmem:[#allocation7 + $0x10] sm:$0xff]
    %v57 = vld [vmem:[#allocation7 + $0x18] sm:$0xff]
    %v58 = vld [vmem:[#allocation7 + $0x20] sm:$0xff]
    %v59 = vld [vmem:[#allocation7 + $0x28] sm:$0xff]
    %v60 = vld [vmem:[#allocation7 + $0x30] sm:$0xff]
    %v61 = vld [vmem:[#allocation7 + $0x38] sm:$0xff]
    %v62 = vld [vmem:[#allocation7 + $0x40] sm:$0xff]
    %v63 = vld [vmem:[#allocation7 + $0x48] sm:$0xff]
    %v64 = vld [vmem:[#allocation7 + $0x50] sm:$0xff]
    %v65 = vld [vmem:[#allocation7 + $0x58] sm:$0xff]
    %v66 = vld [vmem:[#allocation7 + $0x60] sm:$0xff]
    %v67 = vld [vmem:[#allocation7 + $0x68] sm:$0xff]
    %v68 = vld [vmem:[#allocation7 + $0x70] sm:$0xff]
    %v69 = vld [vmem:[#allocation7 + $0x78] sm:$0xff]
    %v70 = vld [vmem:[#allocation7 + $0x80] sm:$0xff]
    %v71 = vld [vmem:[#allocation7 + $0x88] sm:$0xff]
    %v72 = vld [vmem:[#allocation7 + $0x90] sm:$0xff]
    %v73 = vld [vmem:[#allocation7 + $0x98] sm:$0xff]
    %v74 = vld [vmem:[#allocation7 + $0xa0] sm:$0xff]
    %v75 = vld [vmem:[#allocation7 + $0xa8] sm:$0xff]
    %v76 = vld [vmem:[#allocation7 + $0xb0] sm:$0xff]
    %v77 = vld [vmem:[#allocation7 + $0xb8] sm:$0xff]
    %v78 = vld [vmem:[#allocation7 + $0xc0] sm:$0xff]
    %v79 = vld [vmem:[#allocation7 + $0xc8] sm:$0xff]
    %v80 = vld [vmem:[#allocation7 + $0xd0] sm:$0xff]
    %v81 = vld [vmem:[#allocation7 + $0xd8] sm:$0xff]
    %v82 = vld [vmem:[#allocation7 + $0xe0] sm:$0xff]
    %v83 = vld [vmem:[#allocation7 + $0xe8] sm:$0xff]
    %v84 = vld [vmem:[#allocation7 + $0xf0] sm:$0xff]
    %v85 = vld [vmem:[#allocation7 + $0xf8] sm:$0xff]
    %v86 = vld [vmem:[#allocation7 + $0x100] sm:$0xff]
    %v87 = vld [vmem:[#allocation7 + $0x108] sm:$0xff]
    %v88 = vld [vmem:[#allocation7 + $0x110] sm:$0xff]
    %v89 = vld [vmem:[#allocation7 + $0x118] sm:$0xff]
    %v90 = vld [vmem:[#allocation7 + $0x120] sm:$0xff]
    %v91 = vld [vmem:[#allocation7 + $0x128] sm:$0xff]
    %v92 = vld [vmem:[#allocation7 + $0x130] sm:$0xff]
    %v93 = vld [vmem:[#allocation7 + $0x138] sm:$0xff]
    %v94 = vld [vmem:[#allocation7 + $0x140] sm:$0xff]
    %v95 = vld [vmem:[#allocation7 + $0x148] sm:$0xff]
    %v96 = vld [vmem:[#allocation7 + $0x150] sm:$0xff]
    %v97 = vld [vmem:[#allocation7 + $0x158] sm:$0xff]
    %v98 = vld [vmem:[#allocation7 + $0x160] sm:$0xff]
    %v99 = vld [vmem:[#allocation7 + $0x168] sm:$0xff]
    %v100 = vld [vmem:[#allocation7 + $0x170] sm:$0xff]
    %v101 = vld [vmem:[#allocation7 + $0x178] sm:$0xff]
    %v102 = vld [vmem:[#allocation7 + $0x180] sm:$0xff]
    %v103 = vld [vmem:[#allocation7 + $0x188] sm:$0xff]
    %v104 = vld [vmem:[#allocation7 + $0x190] sm:$0xff]
    %v105 = vld [vmem:[#allocation7 + $0x198] sm:$0xff]
    %v106 = vld [vmem:[#allocation7 + $0x1a0] sm:$0xff]
    %v107 = vld [vmem:[#allocation7 + $0x1a8] sm:$0xff]
    %v108 = vld [vmem:[#allocation7 + $0x1b0] sm:$0xff]
    %v109 = vld [vmem:[#allocation7 + $0x1b8] sm:$0xff]
    %v110 = vld [vmem:[#allocation7 + $0x1c0] sm:$0xff]
    %v111 = vld [vmem:[#allocation7 + $0x1c8] sm:$0xff]
    %v112 = vld [vmem:[#allocation7 + $0x1d0] sm:$0xff]
    %v113 = vld [vmem:[#allocation7 + $0x1d8] sm:$0xff]
    %v114 = vld [vmem:[#allocation7 + $0x1e0] sm:$0xff]
    %v115 = vld [vmem:[#allocation7 + $0x1e8] sm:$0xff]
    %v116 = vld [vmem:[#allocation7 + $0x1f0] sm:$0xff]
    %v117 = vld [vmem:[#allocation7 + $0x1f8] sm:$0xff]
    %v118 = vld [vmem:[#allocation7 + $0x200] sm:$0xff]
    %v119 = vld [vmem:[#allocation7 + $0x208] sm:$0xff]
    %v120 = vld [vmem:[#allocation7 + $0x210] sm:$0xff]
    %v121 = vld [vmem:[#allocation7 + $0x218] sm:$0xff]
    %v122 = vld [vmem:[#allocation7 + $0x220] sm:$0xff]
    %v123 = vld [vmem:[#allocation7 + $0x228] sm:$0xff]
    %v124 = vld [vmem:[#allocation7 + $0x230] sm:$0xff]
    %v125 = vld [vmem:[#allocation7 + $0x238] sm:$0xff]
    %v126 = vld [vmem:[#allocation7 + $0x240] sm:$0xff]
    %v127 = vld [vmem:[#allocation7 + $0x248] sm:$0xff]
    %v128 = vld [vmem:[#allocation7 + $0x250] sm:$0xff]
    %v129 = vld [vmem:[#allocation7 + $0x258] sm:$0xff]
    %v130 = vld [vmem:[#allocation7 + $0x260] sm:$0xff]
    %v131 = vld [vmem:[#allocation7 + $0x268] sm:$0xff]
    %v132 = vld [vmem:[#allocation7 + $0x270] sm:$0xff]
    %v133 = vld [vmem:[#allocation7 + $0x278] sm:$0xff]
    %v134 = vld [vmem:[#allocation7 + $0x280] sm:$0xff]
    %v135 = vld [vmem:[#allocation7 + $0x288] sm:$0xff]
    %v136 = vld [vmem:[#allocation7 + $0x290] sm:$0xff]
    %v137 = vld [vmem:[#allocation7 + $0x298] sm:$0xff]
    %v138 = vld [vmem:[#allocation7 + $0x2a0] sm:$0xff]
    %v139 = vld [vmem:[#allocation7 + $0x2a8] sm:$0xff]
    %v140 = vld [vmem:[#allocation7 + $0x2b0] sm:$0xff]
    %v141 = vld [vmem:[#allocation7 + $0x2b8] sm:$0xff]
    %v142 = vld [vmem:[#allocation7 + $0x2c0] sm:$0xff]
    %v143 = vld [vmem:[#allocation7 + $0x2c8] sm:$0xff]
    %v144 = vld [vmem:[#allocation7 + $0x2d0] sm:$0xff]
    %v145 = vld [vmem:[#allocation7 + $0x2d8] sm:$0xff]
    %v146 = vld [vmem:[#allocation7 + $0x2e0] sm:$0xff]
    %v147 = vld [vmem:[#allocation7 + $0x2e8] sm:$0xff]
    %v148 = vld [vmem:[#allocation7 + $0x2f0] sm:$0xff]
    %v149 = vld [vmem:[#allocation7 + $0x2f8] sm:$0xff]
    %v150 = vld [vmem:[#allocation7 + $0x300] sm:$0xff]
    %v151 = vld [vmem:[#allocation7 + $0x308] sm:$0xff]
    %v152 = vld [vmem:[%s4] sm:$0x1]
    %v154 = vlaneseq
    %v155 = vshrl.u32 %v154, 7
    %v156 = vsub.s32 0, %v155
    %v157 = vrot.slane %v152, %v156
    %v161 = vcombine.high %v52, %v52
    %v163 = vunpack.c.l.s4 1983009808
    %v164 = vunpack.c.0.s8 %v163
    %v165 = vlaneseq
    %v166 = vshrl.u32 %v165, 7
    %v167 = vsub.s32 %v164, %v166
    %v168 = vrot.slane %v52, %v167
    %v170 = vunpack.c.l.s4 1983009808
    %v171 = vunpack.c.0.s8 %v170
    %v172 = vlaneseq
    %v173 = vshrl.u32 %v172, 7
    %v174 = vsub.s32 %v171, %v173
    %v175 = vrot.slane %v161, %v174
    %v176 = vcombine.high %v168, %v168
    %v177 = vcombine.high %v175, %v175
    %v178 = vcombine.high %v53, %v53
    %v180 = vunpack.c.l.s4 1983009808
    %v181 = vunpack.c.0.s8 %v180
    %v182 = vlaneseq
    %v183 = vshrl.u32 %v182, 7
    %v184 = vsub.s32 %v181, %v183
    %v185 = vrot.slane %v53, %v184
    %v187 = vunpack.c.l.s4 1983009808
    %v188 = vunpack.c.0.s8 %v187
    %v189 = vlaneseq
    %v190 = vshrl.u32 %v189, 7
    %v191 = vsub.s32 %v188, %v190
    %v192 = vrot.slane %v178, %v191
    %v193 = vcombine.high %v185, %v185
    %vm200 = vcmask 130048
    %v201 = vsel %vm200, %v192, 0
    %203 = vmatprep.subr.mxu0 0.0
    %204 = vmatpush1.msra.mxu0 %v54
    %205 = vmatprep.subr.mxu0 0.0
    %206 = vmatpush1.msra.mxu0 %v55
    %207 = vmatprep.subr.mxu0 0.0
    %208 = vmatpush1.msra.mxu0 %v56
    %209 = vmatprep.subr.mxu0 0.0
    %210 = vmatpush1.msra.mxu0 %v57
    %211 = vmatprep.subr.mxu0 0.0
    %212 = vmatpush1.msra.mxu0 %v58
    %213 = vmatprep.subr.mxu0 0.0
    %214 = vmatpush1.msra.mxu0 %v59
    %215 = vmatprep.subr.mxu0 0.0
    %216 = vmatpush1.msra.mxu0 %v60
    %217 = vmatprep.subr.mxu0 0.0
    %218 = vmatpush1.msra.mxu0 %v61
    %219 = vmatprep.subr.mxu0 0.0
    %220 = vmatpush1.msra.mxu0 %v62
    %221 = vmatprep.subr.mxu0 0.0
    %222 = vmatpush1.msra.mxu0 %v63
    %223 = vmatprep.subr.mxu0 0.0
    %224 = vmatpush1.msra.mxu0 %v64
    %225 = vmatprep.subr.mxu0 0.0
    %226 = vmatpush1.msra.mxu0 %v65
    %227 = vmatprep.subr.mxu0 0.0
    %228 = vmatpush1.msra.mxu0 %v66
    %229 = vmatprep.subr.mxu0 0.0
    %230 = vmatpush1.msra.mxu0 %v67
    %231 = vmatprep.subr.mxu0 0.0
    %232 = vmatpush1.msra.mxu0 %v68
    %233 = vmatprep.subr.mxu0 0.0
    %234 = vmatpush1.msra.mxu0 %v69
    %235 = vmatprep.subr.mxu0 0.0
    %236 = vmatpush1.msra.mxu0 %v70
    %237 = vmatprep.subr.mxu0 0.0
    %238 = vmatpush1.msra.mxu0 %v71
    %239 = vmatprep.subr.mxu0 0.0
    %240 = vmatpush1.msra.mxu0 %v72
    %241 = vmatprep.subr.mxu0 0.0
    %242 = vmatpush1.msra.mxu0 %v73
    %243 = vmatprep.subr.mxu0 0.0
    %244 = vmatpush1.msra.mxu0 %v74
    %245 = vmatprep.subr.mxu0 0.0
    %246 = vmatpush1.msra.mxu0 %v75
    %247 = vmatprep.subr.mxu0 0.0
    %248 = vmatpush1.msra.mxu0 %v76
    %249 = vmatprep.subr.mxu0 0.0
    %250 = vmatpush1.msra.mxu0 %v77
    %251 = vmatprep.subr.mxu0 0.0
    %252 = vmatpush1.msra.mxu0 %v78
    %253 = vmatprep.subr.mxu0 0.0
    %254 = vmatpush1.msra.mxu0 %v79
    %255 = vmatprep.subr.mxu0 0.0
    %256 = vmatpush1.msra.mxu0 %v80
    %257 = vmatprep.subr.mxu0 0.0
    %258 = vmatpush1.msra.mxu0 %v81
    %259 = vmatprep.subr.mxu0 0.0
    %260 = vmatpush1.msra.mxu0 %v82
    %261 = vmatprep.subr.mxu0 0.0
    %262 = vmatpush1.msra.mxu0 %v83
    %263 = vmatprep.subr.mxu0 0.0
    %264 = vmatpush1.msra.mxu0 %v84
    %265 = vmatprep.subr.mxu0 0.0
    %266 = vmatpush1.msra.mxu0 %v85
    %267 = vmatprep.mubr.f32.mxu0 %v176
    %268 = vmatmul.mubr.f32.gmra.mrb[0].mxu0 %v168
    %v269 = vpop.f32.mrb[0].mxu0
    %v270 = vadd.f32 %v157, %v269
    %v271 = vpop.f32.mrb[0].mxu0
    %272 = vdwg.mxu0
    %273 = vmatprep.subr.mxu0 0.0
    %274 = vmatpush1.msra.mxu0 %v86
    %275 = vmatprep.subr.mxu0 0.0
    %276 = vmatpush1.msra.mxu0 %v87
    %277 = vmatprep.subr.mxu0 0.0
    %278 = vmatpush1.msra.mxu0 %v88
    %279 = vmatprep.subr.mxu0 0.0
    %280 = vmatpush1.msra.mxu0 %v89
    %281 = vmatprep.subr.mxu0 0.0
    %282 = vmatpush1.msra.mxu0 %v90
    %283 = vmatprep.subr.mxu0 0.0
    %284 = vmatpush1.msra.mxu0 %v91
    %285 = vmatprep.subr.mxu0 0.0
    %286 = vmatpush1.msra.mxu0 %v92
    %287 = vmatprep.subr.mxu0 0.0
    %288 = vmatpush1.msra.mxu0 %v93
    %289 = vmatprep.subr.mxu0 0.0
    %290 = vmatpush1.msra.mxu0 %v94
    %291 = vmatprep.subr.mxu0 0.0
    %292 = vmatpush1.msra.mxu0 %v95
    %293 = vmatprep.subr.mxu0 0.0
    %294 = vmatpush1.msra.mxu0 %v96
    %295 = vmatprep.subr.mxu0 0.0
    %296 = vmatpush1.msra.mxu0 %v97
    %297 = vmatprep.subr.mxu0 0.0
    %298 = vmatpush1.msra.mxu0 %v98
    %299 = vmatprep.subr.mxu0 0.0
    %300 = vmatpush1.msra.mxu0 %v99
    %301 = vmatprep.subr.mxu0 0.0
    %302 = vmatpush1.msra.mxu0 %v100
    %303 = vmatprep.subr.mxu0 0.0
    %304 = vmatpush1.msra.mxu0 %v101
    %305 = vmatprep.subr.mxu0 0.0
    %306 = vmatpush1.msra.mxu0 %v102
    %307 = vmatprep.subr.mxu0 0.0
    %308 = vmatpush1.msra.mxu0 %v103
    %309 = vmatprep.subr.mxu0 0.0
    %310 = vmatpush1.msra.mxu0 %v104
    %311 = vmatprep.subr.mxu0 0.0
    %312 = vmatpush1.msra.mxu0 %v105
    %313 = vmatprep.subr.mxu0 0.0
    %314 = vmatpush1.msra.mxu0 %v106
    %315 = vmatprep.subr.mxu0 0.0
    %316 = vmatpush1.msra.mxu0 %v107
    %317 = vmatprep.subr.mxu0 0.0
    %318 = vmatpush1.msra.mxu0 %v108
    %319 = vmatprep.subr.mxu0 0.0
    %320 = vmatpush1.msra.mxu0 %v109
    %321 = vmatprep.subr.mxu0 0.0
    %322 = vmatpush1.msra.mxu0 %v110
    %323 = vmatprep.subr.mxu0 0.0
    %324 = vmatpush1.msra.mxu0 %v111
    %325 = vmatprep.subr.mxu0 0.0
    %326 = vmatpush1.msra.mxu0 %v112
    %327 = vmatprep.subr.mxu0 0.0
    %328 = vmatpush1.msra.mxu0 %v113
    %329 = vmatprep.subr.mxu0 0.0
    %330 = vmatpush1.msra.mxu0 %v114
    %331 = vmatprep.subr.mxu0 0.0
    %332 = vmatpush1.msra.mxu0 %v115
    %333 = vmatprep.subr.mxu0 0.0
    %334 = vmatpush1.msra.mxu0 %v116
    %335 = vmatprep.subr.mxu0 0.0
    %336 = vmatpush1.msra.mxu0 %v117
    %337 = vmatprep.mubr.f32.mxu0 %v177
    %338 = vmatmul.mubr.f32.gmra.mrb[0].mxu0 %v175
    %v339 = vpop.f32.mrb[0].mxu0
    %v340 = vadd.f32 %v270, %v339
    %v341 = vpop.f32.mrb[0].mxu0
    %342 = vdwg.mxu0
    %343 = vmatprep.subr.mxu0 0.0
    %344 = vmatpush1.msra.mxu0 %v118
    %345 = vmatprep.subr.mxu0 0.0
    %346 = vmatpush1.msra.mxu0 %v119
    %347 = vmatprep.subr.mxu0 0.0
    %348 = vmatpush1.msra.mxu0 %v120
    %349 = vmatprep.subr.mxu0 0.0
    %350 = vmatpush1.msra.mxu0 %v121
    %351 = vmatprep.subr.mxu0 0.0
    %352 = vmatpush1.msra.mxu0 %v122
    %353 = vmatprep.subr.mxu0 0.0
    %354 = vmatpush1.msra.mxu0 %v123
    %355 = vmatprep.subr.mxu0 0.0
    %356 = vmatpush1.msra.mxu0 %v124
    %357 = vmatprep.subr.mxu0 0.0
    %358 = vmatpush1.msra.mxu0 %v125
    %359 = vmatprep.subr.mxu0 0.0
    %360 = vmatpush1.msra.mxu0 %v126
    %361 = vmatprep.subr.mxu0 0.0
    %362 = vmatpush1.msra.mxu0 %v127
    %363 = vmatprep.subr.mxu0 0.0
    %364 = vmatpush1.msra.mxu0 %v128
    %365 = vmatprep.subr.mxu0 0.0
    %366 = vmatpush1.msra.mxu0 %v129
    %367 = vmatprep.subr.mxu0 0.0
    %368 = vmatpush1.msra.mxu0 %v130
    %369 = vmatprep.subr.mxu0 0.0
    %370 = vmatpush1.msra.mxu0 %v131
    %371 = vmatprep.subr.mxu0 0.0
    %372 = vmatpush1.msra.mxu0 %v132
    %373 = vmatprep.subr.mxu0 0.0
    %374 = vmatpush1.msra.mxu0 %v133
    %375 = vmatprep.subr.mxu0 0.0
    %376 = vmatpush1.msra.mxu0 %v134
    %377 = vmatprep.subr.mxu0 0.0
    %378 = vmatpush1.msra.mxu0 %v135
    %379 = vmatprep.subr.mxu0 0.0
    %380 = vmatpush1.msra.mxu0 %v136
    %381 = vmatprep.subr.mxu0 0.0
    %382 = vmatpush1.msra.mxu0 %v137
    %383 = vmatprep.subr.mxu0 0.0
    %384 = vmatpush1.msra.mxu0 %v138
    %385 = vmatprep.subr.mxu0 0.0
    %386 = vmatpush1.msra.mxu0 %v139
    %387 = vmatprep.subr.mxu0 0.0
    %388 = vmatpush1.msra.mxu0 %v140
    %389 = vmatprep.subr.mxu0 0.0
    %390 = vmatpush1.msra.mxu0 %v141
    %391 = vmatprep.subr.mxu0 0.0
    %392 = vmatpush1.msra.mxu0 %v142
    %393 = vmatprep.subr.mxu0 0.0
    %394 = vmatpush1.msra.mxu0 %v143
    %395 = vmatprep.subr.mxu0 0.0
    %396 = vmatpush1.msra.mxu0 %v144
    %397 = vmatprep.subr.mxu0 0.0
    %398 = vmatpush1.msra.mxu0 %v145
    %399 = vmatprep.subr.mxu0 0.0
    %400 = vmatpush1.msra.mxu0 %v146
    %401 = vmatprep.subr.mxu0 0.0
    %402 = vmatpush1.msra.mxu0 %v147
    %403 = vmatprep.subr.mxu0 0.0
    %404 = vmatpush1.msra.mxu0 %v148
    %405 = vmatprep.subr.mxu0 0.0
    %406 = vmatpush1.msra.mxu0 %v149
    %407 = vmatprep.mubr.f32.mxu0 %v193
    %408 = vmatmul.mubr.f32.gmra.mrb[0].mxu0 %v185
    %v409 = vpop.f32.mrb[0].mxu0
    %v410 = vadd.f32 %v340, %v409
    %v411 = vpop.f32.mrb[0].mxu0
    %412 = vdwg.mxu0
    %413 = vmatprep.subr.mxu0 0.0
    %414 = vmatpush1.msra.mxu0 %v150
    %415 = vmatprep.subr.mxu0 0.0
    %416 = vmatpush1.msra.mxu0 %v151
    %417 = vmatprep.subr.mxu0 0.0
    %418 = vmatpush1.msra.mxu0 0.0
    %419 = vmatprep.subr.mxu0 0.0
    %420 = vmatpush1.msra.mxu0 0.0
    %421 = vmatprep.subr.mxu0 0.0
    %422 = vmatpush1.msra.mxu0 0.0
    %423 = vmatprep.subr.mxu0 0.0
    %424 = vmatpush1.msra.mxu0 0.0
    %425 = vmatprep.subr.mxu0 0.0
    %426 = vmatpush1.msra.mxu0 0.0
    %427 = vmatprep.subr.mxu0 0.0
    %428 = vmatpush1.msra.mxu0 0.0
    %429 = vmatprep.subr.mxu0 0.0
    %430 = vmatpush1.msra.mxu0 0.0
    %431 = vmatprep.subr.mxu0 0.0
    %432 = vmatpush1.msra.mxu0 0.0
    %433 = vmatprep.subr.mxu0 0.0
    %434 = vmatpush1.msra.mxu0 0.0
    %435 = vmatprep.subr.mxu0 0.0
    %436 = vmatpush1.msra.mxu0 0.0
    %437 = vmatprep.subr.mxu0 0.0
    %438 = vmatpush1.msra.mxu0 0.0
    %439 = vmatprep.subr.mxu0 0.0
    %440 = vmatpush1.msra.mxu0 0.0
    %441 = vmatprep.subr.mxu0 0.0
    %442 = vmatpush1.msra.mxu0 0.0
    %443 = vmatprep.subr.mxu0 0.0
    %444 = vmatpush1.msra.mxu0 0.0
    %445 = vmatprep.subr.mxu0 0.0
    %446 = vmatpush1.msra.mxu0 0.0
    %447 = vmatprep.subr.mxu0 0.0
    %448 = vmatpush1.msra.mxu0 0.0
    %449 = vmatprep.subr.mxu0 0.0
    %450 = vmatpush1.msra.mxu0 0.0
    %451 = vmatprep.subr.mxu0 0.0
    %452 = vmatpush1.msra.mxu0 0.0
    %453 = vmatprep.subr.mxu0 0.0
    %454 = vmatpush1.msra.mxu0 0.0
    %455 = vmatprep.subr.mxu0 0.0
    %456 = vmatpush1.msra.mxu0 0.0
    %457 = vmatprep.subr.mxu0 0.0
    %458 = vmatpush1.msra.mxu0 0.0
    %459 = vmatprep.subr.mxu0 0.0
    %460 = vmatpush1.msra.mxu0 0.0
    %461 = vmatprep.subr.mxu0 0.0
    %462 = vmatpush1.msra.mxu0 0.0
    %463 = vmatprep.subr.mxu0 0.0
    %464 = vmatpush1.msra.mxu0 0.0
    %465 = vmatprep.subr.mxu0 0.0
    %466 = vmatpush1.msra.mxu0 0.0
    %467 = vmatprep.subr.mxu0 0.0
    %468 = vmatpush1.msra.mxu0 0.0
    %469 = vmatprep.subr.mxu0 0.0
    %470 = vmatpush1.msra.mxu0 0.0
    %471 = vmatprep.subr.mxu0 0.0
    %472 = vmatpush1.msra.mxu0 0.0
    %473 = vmatprep.subr.mxu0 0.0
    %474 = vmatpush1.msra.mxu0 0.0
    %475 = vmatprep.subr.mxu0 0.0
    %476 = vmatpush1.msra.mxu0 0.0
    %477 = vmatprep.mubr.f32.mxu0 0.0
    %478 = vmatmul.mubr.f32.gmra.mrb[0].mxu0 %v201
    %v479 = vpop.f32.mrb[0].mxu0
    %v480 = vadd.f32 %v410, %v479
    %v481 = vpop.f32.mrb[0].mxu0
    %482 = vdwg.mxu0
    %v483 = vmax.f32 %v480, 0.0
    %s484 = sld [smem:[#allocation3]]
    %s485 = sld [smem:[#allocation3 + $0x1]]
    %s486 = sld [smem:[#allocation2]]
    %v487 = vstv %s484
    %v488 = vmax.f32 %v487, %v483
    %v489 = vstv %s485
    %v490 = vmin.f32 %v489, %v488
    %v491 = vlaneseq
    %v492 = vand.u32 %v491, 127
    %p493 = scmp.lt.s32.totalorder %s486, 0
    %v494 = vstv %s486
    %vm495 = vcmp.eq.s32.totalorder %v492, %v494
    %s496 = scalar_select %p493, 1, 0
    %v497 = vstv %s496
    %vm498 = vcmp.eq.s32.totalorder %v497, 1
    %vm499 = vmor %vm498, %vm495
    %v500 = vsel %vm499, %v490, %v483
    %v501 = vld [vmem:[%s5] sm:$0xff]
    %v502 = vld [vmem:[%s5 + $0x8] sm:$0xff]
    %v503 = vld [vmem:[%s5 + $0x10] sm:$0xff]
    %v504 = vld [vmem:[%s5 + $0x18] sm:$0xff]
    %v505 = vld [vmem:[%s5 + $0x20] sm:$0xff]
    %v506 = vld [vmem:[%s5 + $0x28] sm:$0xff]
    %v507 = vld [vmem:[%s5 + $0x30] sm:$0xff]
    %v508 = vld [vmem:[%s5 + $0x38] sm:$0xff]
    %v509 = vld [vmem:[%s5 + $0x40] sm:$0xff]
    %v510 = vld [vmem:[%s5 + $0x48] sm:$0xff]
    %v511 = vld [vmem:[%s5 + $0x50] sm:$0xff]
    %v512 = vld [vmem:[%s5 + $0x58] sm:$0xff]
    %v513 = vld [vmem:[%s5 + $0x60] sm:$0xff]
    %v514 = vld [vmem:[%s5 + $0x68] sm:$0xff]
    %v515 = vld [vmem:[%s5 + $0x70] sm:$0xff]
    %v516 = vld [vmem:[%s5 + $0x78] sm:$0xff]
    %517 = vmatprep.subr.mxu0 0.0
    %518 = vmatpush1.msra.mxu0 %v501
    %519 = vmatprep.subr.mxu0 0.0
    %520 = vmatpush1.msra.mxu0 %v502
    %521 = vmatprep.subr.mxu0 0.0
    %522 = vmatpush1.msra.mxu0 %v503
    %523 = vmatprep.subr.mxu0 0.0
    %524 = vmatpush1.msra.mxu0 %v504
    %525 = vmatprep.subr.mxu0 0.0
    %526 = vmatpush1.msra.mxu0 %v505
    %527 = vmatprep.subr.mxu0 0.0
    %528 = vmatpush1.msra.mxu0 %v506
    %529 = vmatprep.subr.mxu0 0.0
    %530 = vmatpush1.msra.mxu0 %v507
    %531 = vmatprep.subr.mxu0 0.0
    %532 = vmatpush1.msra.mxu0 %v508
    %533 = vmatprep.subr.mxu0 0.0
    %534 = vmatpush1.msra.mxu0 %v509
    %535 = vmatprep.subr.mxu0 0.0
    %536 = vmatpush1.msra.mxu0 %v510
    %537 = vmatprep.subr.mxu0 0.0
    %538 = vmatpush1.msra.mxu0 %v511
    %539 = vmatprep.subr.mxu0 0.0
    %540 = vmatpush1.msra.mxu0 %v512
    %541 = vmatprep.subr.mxu0 0.0
    %542 = vmatpush1.msra.mxu0 %v513
    %543 = vmatprep.subr.mxu0 0.0
    %544 = vmatpush1.msra.mxu0 %v514
    %545 = vmatprep.subr.mxu0 0.0
    %546 = vmatpush1.msra.mxu0 %v515
    %547 = vmatprep.subr.mxu0 0.0
    %548 = vmatpush1.msra.mxu0 %v516
    %549 = vmatprep.subr.mxu0 0.0
    %550 = vmatpush1.msra.mxu0 0.0
    %551 = vmatprep.subr.mxu0 0.0
    %552 = vmatpush1.msra.mxu0 0.0
    %553 = vmatprep.subr.mxu0 0.0
    %554 = vmatpush1.msra.mxu0 0.0
    %555 = vmatprep.subr.mxu0 0.0
    %556 = vmatpush1.msra.mxu0 0.0
    %557 = vmatprep.subr.mxu0 0.0
    %558 = vmatpush1.msra.mxu0 0.0
    %559 = vmatprep.subr.mxu0 0.0
    %560 = vmatpush1.msra.mxu0 0.0
    %561 = vmatprep.subr.mxu0 0.0
    %562 = vmatpush1.msra.mxu0 0.0
    %563 = vmatprep.subr.mxu0 0.0
    %564 = vmatpush1.msra.mxu0 0.0
    %565 = vmatprep.subr.mxu0 0.0
    %566 = vmatpush1.msra.mxu0 0.0
    %567 = vmatprep.subr.mxu0 0.0
    %568 = vmatpush1.msra.mxu0 0.0
    %569 = vmatprep.subr.mxu0 0.0
    %570 = vmatpush1.msra.mxu0 0.0
    %571 = vmatprep.subr.mxu0 0.0
    %572 = vmatpush1.msra.mxu0 0.0
    %573 = vmatprep.subr.mxu0 0.0
    %574 = vmatpush1.msra.mxu0 0.0
    %575 = vmatprep.subr.mxu0 0.0
    %576 = vmatpush1.msra.mxu0 0.0
    %577 = vmatprep.subr.mxu0 0.0
    %578 = vmatpush1.msra.mxu0 0.0
    %579 = vmatprep.subr.mxu0 0.0
    %580 = vmatpush1.msra.mxu0 0.0
    %581 = vmatprep.mubr.f32.mxu0 0.0
    %582 = vmatmul.mubr.f32.gmra.mrb[0].mxu0 %v500
    %v583 = vpop.f32.mrb[0].mxu0
    %v584 = vadd.f32 0.0, %v583
    %v585 = vpop.f32.mrb[0].mxu0
    %586 = vdwg.mxu0
    %v587 = vmax.f32 %v584, 0.0
    %v588 = vsub.f32 0.0, %v587
    %vm589 = vcmask 74752
    %590 = vst.msk [vmem:[#allocation8] sm:$0x3] %vm589, %v588
    // Predicated region
    $region34: #{_model_forward.1} parent=1 // pred_check
      _
    $region35: #{_model_forward.1} parent=1 // pred_check_branch
      %592 = sbr.rel (0) target = $region37
    $region36: #{_model_forward.1} parent=1 // pred_region
      %s594 = ssub.s32 32, 32
      %595 = vsyncadd [#allocation5], %s594
      %s597 = sshll.u32 [#allocation8], 4
      %s598 = int_to_ptr.vmem [resolvable:$true] %s597
      %600 = dma.vmem_to_hbm [thread:$0]  %s598, 32, %s6, [#allocation5]
    $region37: #{_model_forward.1} parent=1 // pred_fallthru
      _
    // Predicated region
    $region38: #{_model_forward.1} parent=1 // pred_check
      _
    $region39: #{_model_forward.1} parent=1 // pred_check_branch
      %602 = sbr.rel (0) target = $region41
    $region40: #{_model_forward.1} parent=1 // pred_region
      %603 = dma.done [#allocation5], 32
    $region41: #{_model_forward.1} parent=1 // pred_fallthru
      _
    %604 = vsyncpa [#allocation4], 1
    %605 = vsyncpa [#allocation5], 1
    %606 = vsyncpa [#allocation6], 1

</llo_original>
